<compile_context>
chip_gen: v5e
topology: v5e:2x2
jax: 0.10.0
libtpu: 0.0.40
codegen_flags: <defaults>
</compile_context>

<pallas_src>
import jax
import jax.numpy as jnp
from jax.experimental import pallas as pl
from jax.experimental.pallas import tpu as pltpu

VMEM_SPEC = pl.BlockSpec(memory_space=pltpu.MemorySpace.VMEM)
WPAD = 128   # lane-dense width of the parameter slabs and packed output
Z_OFF = 64   # column offset of the latent z inside the packed output slab


def _pad8(r):
    return -(-r // 8) * 8


def _vmem_limit_bytes():
    """Generation-aware VMEM limit: ~75% of physical, clamped to [32,112] MiB."""
    try:
        cap = int(pltpu.get_tpu_info().vmem_capacity_bytes)
        return max(32 * 1024 * 1024, min((cap * 3) // 4, 112 * 1024 * 1024))
    except Exception:
        return 48 * 1024 * 1024


# ---------------------------------------------------------------------------
# Parameter-slab layout (all row offsets are multiples of 8 -> tile-aligned)
# ---------------------------------------------------------------------------
def _build_layouts(nf, ef, h, num_blocks, num_dec):
    w_chunks = [("w_in", nf, h)]
    for i in range(num_blocks):
        w_chunks += [(f"w_gd{i}", h, 2 * h), (f"w_gs{i}", h, 2 * h),
                     (f"w_ge{i}", ef, 2 * h), (f"w_ffw{i}", h, h)]
    for i in range(num_dec):
        w_chunks += [(f"w_dec{i}", h, h)]
    w_chunks += [("w_out", 2 * h, WPAD)]

    wlay, off = {}, 0
    for name, r, c in w_chunks:
        wlay[name] = (off, r, c)
        off += _pad8(r)
    w_rows = off

    b_names = ["b_in"]
    for i in range(num_blocks):
        b_names += [f"b_g{i}", f"b_ffw{i}"]
    for i in range(num_dec):
        b_names += [f"b_dec{i}"]
    b_names += ["b_out"]
    blay = {name: 8 * i for i, name in enumerate(b_names)}
    b_rows = 8 * len(b_names)
    return wlay, w_rows, blay, b_rows


def _pack_params(params, nf, ef, h):
    num_blocks = len(params["blocks"])
    num_dec = len(params["dec_ffw"])
    wlay, w_rows, blay, b_rows = _build_layouts(nf, ef, h, num_blocks, num_dec)

    w_slab = jnp.zeros((w_rows, WPAD), jnp.float32)
    b_slab = jnp.zeros((b_rows, WPAD), jnp.float32)

    def putw(slab, name, mat):
        r0, r, c = wlay[name]
        return slab.at[r0:r0 + r, :c].set(mat.astype(jnp.float32))

    def putb(slab, name, vec):
        v = vec.reshape(1, -1).astype(jnp.float32)
        r0 = blay[name]
        return slab.at[r0:r0 + 1, :v.shape[1]].set(v)

    w_slab = putw(w_slab, "w_in", params["w_in"])
    b_slab = putb(b_slab, "b_in", params["b_in"])

    for i, blk in enumerate(params["blocks"]):
        c = blk["conv"]
        # fuse f/s gates along the output dim -> one [.,2H] matmul family
        w_slab = putw(w_slab, f"w_gd{i}", jnp.concatenate([c["wf_d"], c["ws_d"]], axis=1))
        w_slab = putw(w_slab, f"w_gs{i}", jnp.concatenate([c["wf_s"], c["ws_s"]], axis=1))
        w_slab = putw(w_slab, f"w_ge{i}", jnp.concatenate([c["wf_e"], c["ws_e"]], axis=1))
        b_slab = putb(b_slab, f"b_g{i}", jnp.concatenate([c["bf"], c["bs"]], axis=0))
        w_slab = putw(w_slab, f"w_ffw{i}", blk["ffw"][0])
        b_slab = putb(b_slab, f"b_ffw{i}", blk["ffw"][1])

    for i, (w, b) in enumerate(params["dec_ffw"]):
        w_slab = putw(w_slab, f"w_dec{i}", w)
        b_slab = putb(b_slab, f"b_dec{i}", b)

    # packed output head: cols [0,NF)=node dec, [NF,NF+EF)=edge dec,
    # cols [Z_OFF,Z_OFF+H)=identity copy of the latent (relu(z)==z since z>=0)
    w_nd, b_nd = params["node_dec"]
    w_ed, b_ed = params["edge_dec"]
    w_out = jnp.zeros((2 * h, WPAD), jnp.float32)
    w_out = w_out.at[:h, :nf].set(w_nd).at[:h, nf:nf + ef].set(w_ed)
    w_out = w_out.at[h:, Z_OFF:Z_OFF + h].set(jnp.eye(h, dtype=jnp.float32))
    w_slab = putw(w_slab, "w_out", w_out)

    b_out = jnp.zeros((WPAD,), jnp.float32)
    b_out = b_out.at[:nf].set(b_nd).at[nf:nf + ef].set(b_ed)
    b_slab = putb(b_slab, "b_out", b_out)

    return w_slab, b_slab, wlay, blay, num_blocks, num_dec


# ---------------------------------------------------------------------------
# Fused forward kernel
# ---------------------------------------------------------------------------
def _make_cgae_kernel(nf, ef, h, num_blocks, num_dec, wlay, blay):
    f32 = jnp.float32

    def _sigmoid(x):
        return 1.0 / (1.0 + jnp.exp(-x))

    def _softplus(x):
        # numerically stable softplus (VPU + EUP elementwise)
        return jnp.maximum(x, 0.0) + jnp.log(1.0 + jnp.exp(-jnp.abs(x)))

    def kernel(x_ref, ea_ref, src_ref, dst_ref, w_ref, b_ref, out_ref):
        n = x_ref.shape[0]
        e = ea_ref.shape[0]

        def w(name):
            r0, r, c = wlay[name]
            return w_ref[r0:r0 + r, 0:c]           # static, tile-aligned view

        def b(name, c):
            r0 = blay[name]
            return b_ref[r0:r0 + 1, 0:c]

        def dense_relu(v, wm, bm):
            y = jnp.dot(v, wm, preferred_element_type=f32) + bm
            return jnp.maximum(y, 0.0)

        # one-hot gather matrices (small-graph path), built once, reused
        iota_en = jax.lax.broadcasted_iota(jnp.int32, (e, n), 1)
        g_src = (src_ref[...] == iota_en).astype(f32)     # [E, N]
        g_dst = (dst_ref[...] == iota_en).astype(f32)     # [E, N]
        ea = ea_ref[...]

        # --- Encoder -------------------------------------------------------
        hcur = dense_relu(x_ref[...], w("w_in"), b("b_in", h))      # InputLayer
        for i in range(num_blocks):
            x_i = jnp.dot(g_dst, hcur, preferred_element_type=f32)  # [E, H]
            x_j = jnp.dot(g_src, hcur, preferred_element_type=f32)  # [E, H]
            # fused f/s gates: one [E, 2H] pre-activation
            z2 = (jnp.dot(x_i, w(f"w_gd{i}"), preferred_element_type=f32)
                  + jnp.dot(x_j, w(f"w_gs{i}"), preferred_element_type=f32)
                  + jnp.dot(ea, w(f"w_ge{i}"), preferred_element_type=f32)
                  + b(f"b_g{i}", 2 * h))
            msg = _sigmoid(z2[:, :h]) * _softplus(z2[:, h:])        # [E, H]
            # scatter-add as a transposed contraction of g_dst (no [N,E] buffer)
            agg = jax.lax.dot_general(
                g_dst, msg,
                dimension_numbers=(((0,), (0,)), ((), ())),
                preferred_element_type=f32)                          # [N, H]
            hcur = dense_relu(hcur + agg, w(f"w_ffw{i}"), b(f"b_ffw{i}", h))

        zlat = hcur                                                  # latent (>= 0)

        # --- Decoder -------------------------------------------------------
        d = zlat
        for i in range(num_dec):
            d = dense_relu(d, w(f"w_dec{i}"), b(f"b_dec{i}", h))

        # packed lane-dense output: node dec | edge dec | ... | z | zeros
        r0, _, _ = wlay["w_out"]
        w_head = w_ref[r0:r0 + h, :]          # [H, 128]  (node+edge heads)
        w_zid = w_ref[r0 + h:r0 + 2 * h, :]   # [H, 128]  (identity -> z cols)
        out_lin = (jnp.dot(d, w_head, preferred_element_type=f32)
                   + jnp.dot(zlat, w_zid, preferred_element_type=f32)
                   + b("b_out", WPAD))
        out_ref[...] = jnp.maximum(out_lin, 0.0)

    return kernel


# ---------------------------------------------------------------------------
# Wrapper: slab packing + one pallas_call
# ---------------------------------------------------------------------------
def cgae_forward(params, x, edge_index, edge_attr):
    n, nf = x.shape
    e, ef = edge_attr.shape
    h = params["w_in"].shape[1]
    assert nf + ef <= Z_OFF, "node+edge head columns must fit before Z_OFF"
    assert Z_OFF + h <= WPAD, "latent columns must fit inside the 128-lane slab"

    src = edge_index[0].astype(jnp.int32).reshape(e, 1)
    dst = edge_index[1].astype(jnp.int32).reshape(e, 1)

    w_slab, b_slab, wlay, blay, num_blocks, num_dec = _pack_params(params, nf, ef, h)
    kernel = _make_cgae_kernel(nf, ef, h, num_blocks, num_dec, wlay, blay)

    # advisory cost estimate (the fused kernel otherwise looks "free" to XLA)
    def mm(m, k, o):
        return 2 * m * k * o
    flops = mm(n, nf, h) + n * h
    for _ in range(num_blocks):
        flops += 2 * mm(e, n, h)                        # one-hot gathers
        flops += 2 * mm(e, h, 2 * h) + mm(e, ef, 2 * h)  # fused gate matmuls
        flops += 10 * e * h                             # gate epilogue
        flops += mm(n, e, h) + n * h                    # scatter + residual
        flops += mm(n, h, h) + n * h                    # block FFW
    flops += num_dec * (mm(n, h, h) + n * h)
    flops += 2 * mm(n, h, WPAD) + n * WPAD
    transcendentals = num_blocks * 3 * e * h
    bytes_accessed = 4 * (int(x.size) + int(edge_attr.size) + 2 * e
                          + int(w_slab.size) + int(b_slab.size) + n * WPAD)

    heads = pl.pallas_call(
        kernel,
        out_shape=jax.ShapeDtypeStruct((n, WPAD), jnp.float32),
        in_specs=[VMEM_SPEC] * 6,
        out_specs=VMEM_SPEC,
        compiler_params=pltpu.CompilerParams(vmem_limit_bytes=_vmem_limit_bytes()),
        cost_estimate=pl.CostEstimate(flops=flops,
                                      transcendentals=transcendentals,
                                      bytes_accessed=bytes_accessed),
    )(x, edge_attr, src, dst, w_slab, b_slab)

    x_rec = heads[:, :nf]
    edge_attr_rec = heads[:, nf:nf + ef]
    z = heads[:, Z_OFF:Z_OFF + h]
    return x_rec, edge_attr_rec, z


# ---------------------------------------------------------------------------
# Parameter construction (deterministic, synthetic)
# ---------------------------------------------------------------------------
def _dense(key, n_in, n_out):
    kw, kb = jax.random.split(key)
    lim = 1.0 / jnp.sqrt(jnp.float32(n_in))
    w = jax.random.uniform(kw, (n_in, n_out), jnp.float32, -lim, lim)
    b = jax.random.uniform(kb, (n_out,), jnp.float32, -lim, lim)
    return w, b


def init_params(key, nf, ef, h, enc_layers=2, dec_layers=1):
    keys = jax.random.split(key, 1 + 3 * enc_layers + dec_layers + 2)
    ki = iter(keys)
    w_in, b_in = _dense(next(ki), nf, h)
    params = {"w_in": w_in, "b_in": b_in, "blocks": [], "dec_ffw": []}
    for _ in range(enc_layers):
        wf, bf = _dense(next(ki), 2 * h + ef, h)
        ws, bs = _dense(next(ki), 2 * h + ef, h)
        ffw = _dense(next(ki), h, h)
        params["blocks"].append({
            "conv": {"wf_d": wf[:h], "wf_s": wf[h:2 * h], "wf_e": wf[2 * h:], "bf": bf,
                     "ws_d": ws[:h], "ws_s": ws[h:2 * h], "ws_e": ws[2 * h:], "bs": bs},
            "ffw": ffw})
    for _ in range(dec_layers):
        params["dec_ffw"].append(_dense(next(ki), h, h))
    params["node_dec"] = _dense(next(ki), h, nf)
    params["edge_dec"] = _dense(next(ki), h, ef)
    return params


# ---------------------------------------------------------------------------
# Pure-JAX reference (for correctness check only)
# ---------------------------------------------------------------------------
def cgae_reference(params, x, edge_index, edge_attr):
    def dense(v, w, b):
        return jnp.maximum(v @ w + b, 0.0)
    src, dst = edge_index[0], edge_index[1]
    h = dense(x, params["w_in"], params["b_in"])
    for blk in params["blocks"]:
        c = blk["conv"]
        x_i, x_j = h[dst], h[src]
        zf = x_i @ c["wf_d"] + x_j @ c["wf_s"] + edge_attr @ c["wf_e"] + c["bf"]
        zs = x_i @ c["ws_d"] + x_j @ c["ws_s"] + edge_attr @ c["ws_e"] + c["bs"]
        msg = jax.nn.sigmoid(zf) * jax.nn.softplus(zs)
        agg = jnp.zeros_like(h).at[dst].add(msg)
        h = dense(h + agg, *blk["ffw"])
    z = h
    d = z
    for (w, b) in params["dec_ffw"]:
        d = dense(d, w, b)
    return dense(d, *params["node_dec"]), dense(d, *params["edge_dec"]), z


# ---------------------------------------------------------------------------
if __name__ == "__main__":
    key = jax.random.PRNGKey(0)
    k_x, k_e, k_src, k_dst, k_p = jax.random.split(key, 5)

    N, E = 16, 32            # nodes, edges
    NF, EF, H = 8, 4, 32     # node feats, edge feats, hidden

    x = jax.random.normal(k_x, (N, NF), jnp.float32)
    edge_attr = jax.random.normal(k_e, (E, EF), jnp.float32)
    src = jax.random.randint(k_src, (E,), 0, N)
    dst = jax.random.randint(k_dst, (E,), 0, N)
    edge_index = jnp.stack([src, dst], axis=0)           # [2, E]

    params = init_params(k_p, NF, EF, H, enc_layers=2, dec_layers=1)

    fwd = jax.jit(cgae_forward)
    x_rec, edge_attr_rec, z = fwd(params, x, edge_index, edge_attr)
    jax.block_until_ready((x_rec, edge_attr_rec, z))

    assert x_rec.shape == (N, NF)
    assert edge_attr_rec.shape == (N, EF)
    assert z.shape == (N, H)

    xr, er, zr = cgae_reference(params, x, edge_index, edge_attr)
    for got, want in ((x_rec, xr), (edge_attr_rec, er), (z, zr)):
        assert bool(jnp.allclose(got, want, atol=1e-2, rtol=1e-2)), \
            float(jnp.max(jnp.abs(got - want)))

    print("KERNEL_OK")
</pallas_src>

<mosaic_0001>
module attributes {stable_mosaic.version = 11 : i64} {
  func.func @kernel(%arg0: memref<16x8xf32, #tpu.memory_space<vmem>>, %arg1: memref<32x4xf32, #tpu.memory_space<vmem>>, %arg2: memref<32x1xi32, #tpu.memory_space<vmem>>, %arg3: memref<32x1xi32, #tpu.memory_space<vmem>>, %arg4: memref<312x128xf32, #tpu.memory_space<vmem>>, %arg5: memref<56x128xf32, #tpu.memory_space<vmem>>, %arg6: memref<16x128xf32, #tpu.memory_space<vmem>>) attributes {dimension_semantics = [], scalar_prefetch = 0 : i64, scratch_operands = 0 : i64, tpu.core_type = #tpu.core_type<tc>} {
    %0 = tpu.iota {dimensions = array<i32: 1>} : vector<32x16xi32>
    %c0 = arith.constant 0 : index
    %c0_0 = arith.constant 0 : index
    %1 = vector.load %arg2[%c0, %c0_0] : memref<32x1xi32, #tpu.memory_space<vmem>>, vector<32x1xi32>
    %2 = vector.broadcast %1 : vector<32x1xi32> to vector<32x16xi32>
    %3 = arith.cmpi eq, %2, %0 : vector<32x16xi32>
    %4 = arith.extui %3 : vector<32x16xi1> to vector<32x16xi32>
    %5 = arith.sitofp %4 : vector<32x16xi32> to vector<32x16xf32>
    %c0_1 = arith.constant 0 : index
    %c0_2 = arith.constant 0 : index
    %6 = vector.load %arg3[%c0_1, %c0_2] : memref<32x1xi32, #tpu.memory_space<vmem>>, vector<32x1xi32>
    %7 = vector.broadcast %6 : vector<32x1xi32> to vector<32x16xi32>
    %8 = arith.cmpi eq, %7, %0 : vector<32x16xi32>
    %9 = arith.extui %8 : vector<32x16xi1> to vector<32x16xi32>
    %10 = arith.sitofp %9 : vector<32x16xi32> to vector<32x16xf32>
    %c0_3 = arith.constant 0 : index
    %c0_4 = arith.constant 0 : index
    %11 = vector.load %arg1[%c0_3, %c0_4] : memref<32x4xf32, #tpu.memory_space<vmem>>, vector<32x4xf32>
    %c0_5 = arith.constant 0 : index
    %c0_6 = arith.constant 0 : index
    %12 = vector.load %arg0[%c0_5, %c0_6] : memref<16x8xf32, #tpu.memory_space<vmem>>, vector<16x8xf32>
    %c0_7 = arith.constant 0 : index
    %c0_8 = arith.constant 0 : index
    %13 = vector.load %arg4[%c0_7, %c0_8] : memref<312x128xf32, #tpu.memory_space<vmem>>, vector<8x32xf32>
    %c0_9 = arith.constant 0 : index
    %c0_10 = arith.constant 0 : index
    %14 = vector.load %arg5[%c0_9, %c0_10] : memref<56x128xf32, #tpu.memory_space<vmem>>, vector<1x32xf32>
    %cst = arith.constant dense<0.000000e+00> : vector<16x32xf32>
    %15 = tpu.matmul %12, %13, %cst {dimension_numbers = #tpu.dot_dimension_numbers<[1], [0], [0], [1], [0, 0, 1, 1], [], []>} : vector<16x8xf32>, vector<8x32xf32>, vector<16x32xf32> -> vector<16x32xf32>
    %16 = vector.broadcast %14 : vector<1x32xf32> to vector<16x32xf32>
    %17 = arith.addf %15, %16 : vector<16x32xf32>
    %cst_11 = arith.constant 0.000000e+00 : f32
    %18 = vector.broadcast %cst_11 : f32 to vector<16x32xf32>
    %19 = arith.maximumf %17, %18 : vector<16x32xf32>
    %cst_12 = arith.constant dense<0.000000e+00> : vector<32x32xf32>
    %20 = tpu.matmul %10, %19, %cst_12 {dimension_numbers = #tpu.dot_dimension_numbers<[1], [0], [0], [1], [0, 0, 1, 1], [], []>} : vector<32x16xf32>, vector<16x32xf32>, vector<32x32xf32> -> vector<32x32xf32>
    %cst_13 = arith.constant dense<0.000000e+00> : vector<32x32xf32>
    %21 = tpu.matmul %5, %19, %cst_13 {dimension_numbers = #tpu.dot_dimension_numbers<[1], [0], [0], [1], [0, 0, 1, 1], [], []>} : vector<32x16xf32>, vector<16x32xf32>, vector<32x32xf32> -> vector<32x32xf32>
    %c8 = arith.constant 8 : index
    %c0_14 = arith.constant 0 : index
    %22 = vector.load %arg4[%c8, %c0_14] : memref<312x128xf32, #tpu.memory_space<vmem>>, vector<32x64xf32>
    %cst_15 = arith.constant dense<0.000000e+00> : vector<32x64xf32>
    %23 = tpu.matmul %20, %22, %cst_15 {dimension_numbers = #tpu.dot_dimension_numbers<[1], [0], [0], [1], [0, 0, 1, 1], [], []>} : vector<32x32xf32>, vector<32x64xf32>, vector<32x64xf32> -> vector<32x64xf32>
    %c40 = arith.constant 40 : index
    %c0_16 = arith.constant 0 : index
    %24 = vector.load %arg4[%c40, %c0_16] : memref<312x128xf32, #tpu.memory_space<vmem>>, vector<32x64xf32>
    %cst_17 = arith.constant dense<0.000000e+00> : vector<32x64xf32>
    %25 = tpu.matmul %21, %24, %cst_17 {dimension_numbers = #tpu.dot_dimension_numbers<[1], [0], [0], [1], [0, 0, 1, 1], [], []>} : vector<32x32xf32>, vector<32x64xf32>, vector<32x64xf32> -> vector<32x64xf32>
    %26 = arith.addf %23, %25 : vector<32x64xf32>
    %c72 = arith.constant 72 : index
    %c0_18 = arith.constant 0 : index
    %27 = vector.load %arg4[%c72, %c0_18] : memref<312x128xf32, #tpu.memory_space<vmem>>, vector<4x64xf32>
    %cst_19 = arith.constant dense<0.000000e+00> : vector<32x64xf32>
    %28 = tpu.matmul %11, %27, %cst_19 {dimension_numbers = #tpu.dot_dimension_numbers<[1], [0], [0], [1], [0, 0, 1, 1], [], []>} : vector<32x4xf32>, vector<4x64xf32>, vector<32x64xf32> -> vector<32x64xf32>
    %29 = arith.addf %26, %28 : vector<32x64xf32>
    %c8_20 = arith.constant 8 : index
    %c0_21 = arith.constant 0 : index
    %30 = vector.load %arg5[%c8_20, %c0_21] : memref<56x128xf32, #tpu.memory_space<vmem>>, vector<1x64xf32>
    %31 = vector.broadcast %30 : vector<1x64xf32> to vector<32x64xf32>
    %32 = arith.addf %29, %31 : vector<32x64xf32>
    %33 = vector.extract_strided_slice %32 {offsets = [0, 0], sizes = [32, 32], strides = [1, 1]} : vector<32x64xf32> to vector<32x32xf32>
    %cst_22 = arith.constant 0.000000e+00 : f32
    %34 = vector.broadcast %cst_22 : f32 to vector<32x32xf32>
    %35 = arith.subf %34, %33 : vector<32x32xf32>
    %36 = math.exp %35 : vector<32x32xf32>
    %cst_23 = arith.constant 1.000000e+00 : f32
    %37 = vector.broadcast %cst_23 : f32 to vector<32x32xf32>
    %38 = arith.addf %37, %36 : vector<32x32xf32>
    %cst_24 = arith.constant 1.000000e+00 : f32
    %39 = vector.broadcast %cst_24 : f32 to vector<32x32xf32>
    %40 = arith.divf %39, %38 : vector<32x32xf32>
    %41 = vector.extract_strided_slice %32 {offsets = [0, 32], sizes = [32, 32], strides = [1, 1]} : vector<32x64xf32> to vector<32x32xf32>
    %cst_25 = arith.constant 0.000000e+00 : f32
    %42 = vector.broadcast %cst_25 : f32 to vector<32x32xf32>
    %43 = arith.maximumf %41, %42 : vector<32x32xf32>
    %44 = math.absf %41 : vector<32x32xf32>
    %cst_26 = arith.constant 0.000000e+00 : f32
    %45 = vector.broadcast %cst_26 : f32 to vector<32x32xf32>
    %46 = arith.subf %45, %44 : vector<32x32xf32>
    %47 = math.exp %46 : vector<32x32xf32>
    %cst_27 = arith.constant 1.000000e+00 : f32
    %48 = vector.broadcast %cst_27 : f32 to vector<32x32xf32>
    %49 = arith.addf %48, %47 : vector<32x32xf32>
    %50 = math.log %49 : vector<32x32xf32>
    %51 = arith.addf %43, %50 : vector<32x32xf32>
    %52 = arith.mulf %40, %51 : vector<32x32xf32>
    %cst_28 = arith.constant dense<0.000000e+00> : vector<16x32xf32>
    %53 = tpu.matmul %10, %52, %cst_28 {dimension_numbers = #tpu.dot_dimension_numbers<[0], [0], [1], [1], [0, 1, 1, 1], [], []>} : vector<32x16xf32>, vector<32x32xf32>, vector<16x32xf32> -> vector<16x32xf32>
    %54 = arith.addf %19, %53 : vector<16x32xf32>
    %c80 = arith.constant 80 : index
    %c0_29 = arith.constant 0 : index
    %55 = vector.load %arg4[%c80, %c0_29] : memref<312x128xf32, #tpu.memory_space<vmem>>, vector<32x32xf32>
    %c16 = arith.constant 16 : index
    %c0_30 = arith.constant 0 : index
    %56 = vector.load %arg5[%c16, %c0_30] : memref<56x128xf32, #tpu.memory_space<vmem>>, vector<1x32xf32>
    %cst_31 = arith.constant dense<0.000000e+00> : vector<16x32xf32>
    %57 = tpu.matmul %54, %55, %cst_31 {dimension_numbers = #tpu.dot_dimension_numbers<[1], [0], [0], [1], [0, 0, 1, 1], [], []>} : vector<16x32xf32>, vector<32x32xf32>, vector<16x32xf32> -> vector<16x32xf32>
    %58 = vector.broadcast %56 : vector<1x32xf32> to vector<16x32xf32>
    %59 = arith.addf %57, %58 : vector<16x32xf32>
    %cst_32 = arith.constant 0.000000e+00 : f32
    %60 = vector.broadcast %cst_32 : f32 to vector<16x32xf32>
    %61 = arith.maximumf %59, %60 : vector<16x32xf32>
    %cst_33 = arith.constant dense<0.000000e+00> : vector<32x32xf32>
    %62 = tpu.matmul %10, %61, %cst_33 {dimension_numbers = #tpu.dot_dimension_numbers<[1], [0], [0], [1], [0, 0, 1, 1], [], []>} : vector<32x16xf32>, vector<16x32xf32>, vector<32x32xf32> -> vector<32x32xf32>
    %cst_34 = arith.constant dense<0.000000e+00> : vector<32x32xf32>
    %63 = tpu.matmul %5, %61, %cst_34 {dimension_numbers = #tpu.dot_dimension_numbers<[1], [0], [0], [1], [0, 0, 1, 1], [], []>} : vector<32x16xf32>, vector<16x32xf32>, vector<32x32xf32> -> vector<32x32xf32>
    %c112 = arith.constant 112 : index
    %c0_35 = arith.constant 0 : index
    %64 = vector.load %arg4[%c112, %c0_35] : memref<312x128xf32, #tpu.memory_space<vmem>>, vector<32x64xf32>
    %cst_36 = arith.constant dense<0.000000e+00> : vector<32x64xf32>
    %65 = tpu.matmul %62, %64, %cst_36 {dimension_numbers = #tpu.dot_dimension_numbers<[1], [0], [0], [1], [0, 0, 1, 1], [], []>} : vector<32x32xf32>, vector<32x64xf32>, vector<32x64xf32> -> vector<32x64xf32>
    %c144 = arith.constant 144 : index
    %c0_37 = arith.constant 0 : index
    %66 = vector.load %arg4[%c144, %c0_37] : memref<312x128xf32, #tpu.memory_space<vmem>>, vector<32x64xf32>
    %cst_38 = arith.constant dense<0.000000e+00> : vector<32x64xf32>
    %67 = tpu.matmul %63, %66, %cst_38 {dimension_numbers = #tpu.dot_dimension_numbers<[1], [0], [0], [1], [0, 0, 1, 1], [], []>} : vector<32x32xf32>, vector<32x64xf32>, vector<32x64xf32> -> vector<32x64xf32>
    %68 = arith.addf %65, %67 : vector<32x64xf32>
    %c176 = arith.constant 176 : index
    %c0_39 = arith.constant 0 : index
    %69 = vector.load %arg4[%c176, %c0_39] : memref<312x128xf32, #tpu.memory_space<vmem>>, vector<4x64xf32>
    %cst_40 = arith.constant dense<0.000000e+00> : vector<32x64xf32>
    %70 = tpu.matmul %11, %69, %cst_40 {dimension_numbers = #tpu.dot_dimension_numbers<[1], [0], [0], [1], [0, 0, 1, 1], [], []>} : vector<32x4xf32>, vector<4x64xf32>, vector<32x64xf32> -> vector<32x64xf32>
    %71 = arith.addf %68, %70 : vector<32x64xf32>
    %c24 = arith.constant 24 : index
    %c0_41 = arith.constant 0 : index
    %72 = vector.load %arg5[%c24, %c0_41] : memref<56x128xf32, #tpu.memory_space<vmem>>, vector<1x64xf32>
    %73 = vector.broadcast %72 : vector<1x64xf32> to vector<32x64xf32>
    %74 = arith.addf %71, %73 : vector<32x64xf32>
    %75 = vector.extract_strided_slice %74 {offsets = [0, 0], sizes = [32, 32], strides = [1, 1]} : vector<32x64xf32> to vector<32x32xf32>
    %cst_42 = arith.constant 0.000000e+00 : f32
    %76 = vector.broadcast %cst_42 : f32 to vector<32x32xf32>
    %77 = arith.subf %76, %75 : vector<32x32xf32>
    %78 = math.exp %77 : vector<32x32xf32>
    %cst_43 = arith.constant 1.000000e+00 : f32
    %79 = vector.broadcast %cst_43 : f32 to vector<32x32xf32>
    %80 = arith.addf %79, %78 : vector<32x32xf32>
    %cst_44 = arith.constant 1.000000e+00 : f32
    %81 = vector.broadcast %cst_44 : f32 to vector<32x32xf32>
    %82 = arith.divf %81, %80 : vector<32x32xf32>
    %83 = vector.extract_strided_slice %74 {offsets = [0, 32], sizes = [32, 32], strides = [1, 1]} : vector<32x64xf32> to vector<32x32xf32>
    %cst_45 = arith.constant 0.000000e+00 : f32
    %84 = vector.broadcast %cst_45 : f32 to vector<32x32xf32>
    %85 = arith.maximumf %83, %84 : vector<32x32xf32>
    %86 = math.absf %83 : vector<32x32xf32>
    %cst_46 = arith.constant 0.000000e+00 : f32
    %87 = vector.broadcast %cst_46 : f32 to vector<32x32xf32>
    %88 = arith.subf %87, %86 : vector<32x32xf32>
    %89 = math.exp %88 : vector<32x32xf32>
    %cst_47 = arith.constant 1.000000e+00 : f32
    %90 = vector.broadcast %cst_47 : f32 to vector<32x32xf32>
    %91 = arith.addf %90, %89 : vector<32x32xf32>
    %92 = math.log %91 : vector<32x32xf32>
    %93 = arith.addf %85, %92 : vector<32x32xf32>
    %94 = arith.mulf %82, %93 : vector<32x32xf32>
    %cst_48 = arith.constant dense<0.000000e+00> : vector<16x32xf32>
    %95 = tpu.matmul %10, %94, %cst_48 {dimension_numbers = #tpu.dot_dimension_numbers<[0], [0], [1], [1], [0, 1, 1, 1], [], []>} : vector<32x16xf32>, vector<32x32xf32>, vector<16x32xf32> -> vector<16x32xf32>
    %96 = arith.addf %61, %95 : vector<16x32xf32>
    %c184 = arith.constant 184 : index
    %c0_49 = arith.constant 0 : index
    %97 = vector.load %arg4[%c184, %c0_49] : memref<312x128xf32, #tpu.memory_space<vmem>>, vector<32x32xf32>
    %c32 = arith.constant 32 : index
    %c0_50 = arith.constant 0 : index
    %98 = vector.load %arg5[%c32, %c0_50] : memref<56x128xf32, #tpu.memory_space<vmem>>, vector<1x32xf32>
    %cst_51 = arith.constant dense<0.000000e+00> : vector<16x32xf32>
    %99 = tpu.matmul %96, %97, %cst_51 {dimension_numbers = #tpu.dot_dimension_numbers<[1], [0], [0], [1], [0, 0, 1, 1], [], []>} : vector<16x32xf32>, vector<32x32xf32>, vector<16x32xf32> -> vector<16x32xf32>
    %100 = vector.broadcast %98 : vector<1x32xf32> to vector<16x32xf32>
    %101 = arith.addf %99, %100 : vector<16x32xf32>
    %cst_52 = arith.constant 0.000000e+00 : f32
    %102 = vector.broadcast %cst_52 : f32 to vector<16x32xf32>
    %103 = arith.maximumf %101, %102 : vector<16x32xf32>
    %c216 = arith.constant 216 : index
    %c0_53 = arith.constant 0 : index
    %104 = vector.load %arg4[%c216, %c0_53] : memref<312x128xf32, #tpu.memory_space<vmem>>, vector<32x32xf32>
    %c40_54 = arith.constant 40 : index
    %c0_55 = arith.constant 0 : index
    %105 = vector.load %arg5[%c40_54, %c0_55] : memref<56x128xf32, #tpu.memory_space<vmem>>, vector<1x32xf32>
    %cst_56 = arith.constant dense<0.000000e+00> : vector<16x32xf32>
    %106 = tpu.matmul %103, %104, %cst_56 {dimension_numbers = #tpu.dot_dimension_numbers<[1], [0], [0], [1], [0, 0, 1, 1], [], []>} : vector<16x32xf32>, vector<32x32xf32>, vector<16x32xf32> -> vector<16x32xf32>
    %107 = vector.broadcast %105 : vector<1x32xf32> to vector<16x32xf32>
    %108 = arith.addf %106, %107 : vector<16x32xf32>
    %cst_57 = arith.constant 0.000000e+00 : f32
    %109 = vector.broadcast %cst_57 : f32 to vector<16x32xf32>
    %110 = arith.maximumf %108, %109 : vector<16x32xf32>
    %c248 = arith.constant 248 : index
    %c0_58 = arith.constant 0 : index
    %111 = vector.load %arg4[%c248, %c0_58] : memref<312x128xf32, #tpu.memory_space<vmem>>, vector<32x128xf32>
    %c280 = arith.constant 280 : index
    %c0_59 = arith.constant 0 : index
    %112 = vector.load %arg4[%c280, %c0_59] : memref<312x128xf32, #tpu.memory_space<vmem>>, vector<32x128xf32>
    %cst_60 = arith.constant dense<0.000000e+00> : vector<16x128xf32>
    %113 = tpu.matmul %110, %111, %cst_60 {dimension_numbers = #tpu.dot_dimension_numbers<[1], [0], [0], [1], [0, 0, 1, 1], [], []>} : vector<16x32xf32>, vector<32x128xf32>, vector<16x128xf32> -> vector<16x128xf32>
    %cst_61 = arith.constant dense<0.000000e+00> : vector<16x128xf32>
    %114 = tpu.matmul %103, %112, %cst_61 {dimension_numbers = #tpu.dot_dimension_numbers<[1], [0], [0], [1], [0, 0, 1, 1], [], []>} : vector<16x32xf32>, vector<32x128xf32>, vector<16x128xf32> -> vector<16x128xf32>
    %115 = arith.addf %113, %114 : vector<16x128xf32>
    %c48 = arith.constant 48 : index
    %c0_62 = arith.constant 0 : index
    %116 = vector.load %arg5[%c48, %c0_62] : memref<56x128xf32, #tpu.memory_space<vmem>>, vector<1x128xf32>
    %117 = vector.broadcast %116 : vector<1x128xf32> to vector<16x128xf32>
    %118 = arith.addf %115, %117 : vector<16x128xf32>
    %cst_63 = arith.constant 0.000000e+00 : f32
    %119 = vector.broadcast %cst_63 : f32 to vector<16x128xf32>
    %120 = arith.maximumf %118, %119 : vector<16x128xf32>
    %c0_64 = arith.constant 0 : index
    %c0_65 = arith.constant 0 : index
    %121 = vector.load %arg6[%c0_64, %c0_65] : memref<16x128xf32, #tpu.memory_space<vmem>>, vector<16x128xf32>
    tpu.vector_store %arg6[%c0_64, %c0_65], %120 {strides = array<i32>} : memref<16x128xf32, #tpu.memory_space<vmem>>, vector<16x128xf32>,
    return
  }
}

</mosaic_0001>

<llo_original>
// kernel: cgae_forward.1
$region0: #{cgae_forward.1}
  #allocation0 [shape = 'u32[]', space=smem, size = 0x4, offset = 0x4, fixed_abs, tag = 'smem constant byte address 0x4 - core index']
  #allocation1 [shape = 'u32[72,128]{1,0:T(1,128)}', space=vmem, size = 0x9000, scoped, tag = 'internal scratch']
  %s0 = inlined_call_operand.vmem [shape: f32[16,8], index: 0, kind: input, shape index: {}]
  %s1 = inlined_call_operand.vmem [shape: f32[32,4], index: 1, kind: input, shape index: {}]
  %s2 = inlined_call_operand.vmem [shape: s32[32,1], index: 2, kind: input, shape index: {}]
  %s3 = inlined_call_operand.vmem [shape: s32[32,1], index: 3, kind: input, shape index: {}]
  %s4 = inlined_call_operand.vmem [shape: f32[312,128], index: 4, kind: input, shape index: {}]
  %s5 = inlined_call_operand.vmem [shape: f32[56,128], index: 5, kind: input, shape index: {}]
  %s6 = inlined_call_operand.vmem [shape: f32[16,128], index: 6, kind: output, shape index: {}]
  %s7 = sld [smem:[#allocation0]]
  $region34: #{cgae_forward.1} parent=0
    _
  %s9 = ssub.s32 1, %s7
  %s10 = scalar_select 0, %s9, %s7
  // Predicated region
  $region2: #{cgae_forward.1} parent=0 // pred_check
    _
  $region3: #{cgae_forward.1} parent=0 // pred_check_branch
    %12 = sbr.rel (0) target = $region5
  $region4: #{cgae_forward.1} parent=0 // pred_region
    _
  $region5: #{cgae_forward.1} parent=0 // pred_fallthru
    _
  // Predicated region
  $region6: #{cgae_forward.1} parent=0 // pred_check
    _
  $region7: #{cgae_forward.1} parent=0 // pred_check_branch
    %14 = sbr.rel (0) target = $region9
  $region8: #{cgae_forward.1} parent=0 // pred_region
    _
  $region9: #{cgae_forward.1} parent=0 // pred_fallthru
    _
  // Predicated region
  $region10: #{cgae_forward.1} parent=0 // pred_check
    _
  $region11: #{cgae_forward.1} parent=0 // pred_check_branch
    %16 = sbr.rel (0) target = $region13
  $region12: #{cgae_forward.1} parent=0 // pred_region
    _
  $region13: #{cgae_forward.1} parent=0 // pred_fallthru
    _
  // Predicated region
  $region14: #{cgae_forward.1} parent=0 // pred_check
    _
  $region15: #{cgae_forward.1} parent=0 // pred_check_branch
    %18 = sbr.rel (0) target = $region17
  $region16: #{cgae_forward.1} parent=0 // pred_region
    _
  $region17: #{cgae_forward.1} parent=0 // pred_fallthru
    _
  // Predicated region
  $region18: #{cgae_forward.1} parent=0 // pred_check
    _
  $region19: #{cgae_forward.1} parent=0 // pred_check_branch
    %20 = sbr.rel (0) target = $region21
  $region20: #{cgae_forward.1} parent=0 // pred_region
    _
  $region21: #{cgae_forward.1} parent=0 // pred_fallthru
    _
  // Predicated region
  $region22: #{cgae_forward.1} parent=0 // pred_check
    _
  $region23: #{cgae_forward.1} parent=0 // pred_check_branch
    %22 = sbr.rel (0) target = $region25
  $region24: #{cgae_forward.1} parent=0 // pred_region
    _
  $region25: #{cgae_forward.1} parent=0 // pred_fallthru
    _
  %v23 = vlaneseq
  %v24 = vand.u32 %v23, 127
  %v25 = vld [vmem:[%s2] sm:$0xff]
  %v26 = vld [vmem:[%s2 + $0x8] sm:$0xff]
  %v27 = vld [vmem:[%s2 + $0x10] sm:$0xff]
  %v28 = vld [vmem:[%s2 + $0x18] sm:$0xff]
  %29 = vset.pattern.permute.xlu0 0
  %30 = vperm.xlu0 %29, %v25
  %v31 = vpop.permute.xlu0 %30
  %32 = vset.pattern.permute.xlu0 0
  %33 = vperm.xlu0 %32, %v26
  %v34 = vpop.permute.xlu0 %33
  %35 = vset.pattern.permute.xlu0 0
  %36 = vperm.xlu0 %35, %v27
  %v37 = vpop.permute.xlu0 %36
  %38 = vset.pattern.permute.xlu0 0
  %39 = vperm.xlu0 %38, %v28
  %v40 = vpop.permute.xlu0 %39
  %vm41 = vcmp.eq.s32.totalorder %v31, %v24
  %vm42 = vcmp.eq.s32.totalorder %v34, %v24
  %vm43 = vcmp.eq.s32.totalorder %v37, %v24
  %vm44 = vcmp.eq.s32.totalorder %v40, %v24
  %v45 = vsel %vm41, 1, 0
  %v46 = vsel %vm42, 1, 0
  %v47 = vsel %vm43, 1, 0
  %v48 = vsel %vm44, 1, 0
  %v49 = vcvt.s32.f32 %v45
  %v50 = vcvt.s32.f32 %v46
  %v51 = vcvt.s32.f32 %v47
  %v52 = vcvt.s32.f32 %v48
  %v53 = vld [vmem:[%s3] sm:$0xff]
  %v54 = vld [vmem:[%s3 + $0x8] sm:$0xff]
  %v55 = vld [vmem:[%s3 + $0x10] sm:$0xff]
  %v56 = vld [vmem:[%s3 + $0x18] sm:$0xff]
  %57 = vset.pattern.permute.xlu0 0
  %58 = vperm.xlu0 %57, %v53
  %v59 = vpop.permute.xlu0 %58
  %60 = vset.pattern.permute.xlu0 0
  %61 = vperm.xlu0 %60, %v54
  %v62 = vpop.permute.xlu0 %61
  %63 = vset.pattern.permute.xlu0 0
  %64 = vperm.xlu0 %63, %v55
  %v65 = vpop.permute.xlu0 %64
  %66 = vset.pattern.permute.xlu0 0
  %67 = vperm.xlu0 %66, %v56
  %v68 = vpop.permute.xlu0 %67
  %vm69 = vcmp.eq.s32.totalorder %v59, %v24
  %vm70 = vcmp.eq.s32.totalorder %v62, %v24
  %vm71 = vcmp.eq.s32.totalorder %v65, %v24
  %vm72 = vcmp.eq.s32.totalorder %v68, %v24
  %v73 = vsel %vm69, 1, 0
  %v74 = vsel %vm70, 1, 0
  %v75 = vsel %vm71, 1, 0
  %v76 = vsel %vm72, 1, 0
  %v77 = vcvt.s32.f32 %v73
  %v78 = vcvt.s32.f32 %v74
  %v79 = vcvt.s32.f32 %v75
  %v80 = vcvt.s32.f32 %v76
  %v81 = vld [vmem:[%s1] sm:$0xff]
  %v82 = vld [vmem:[%s1 + $0x8] sm:$0xff]
  %v83 = vld [vmem:[%s1 + $0x10] sm:$0xff]
  %v84 = vld [vmem:[%s1 + $0x18] sm:$0xff]
  %v85 = vld [vmem:[%s0] sm:$0xff]
  %v86 = vld [vmem:[%s0 + $0x8] sm:$0xff]
  %v87 = vld [vmem:[%s4] sm:$0xff]
  %v88 = vld [vmem:[%s5] sm:$0x1]
  %v89 = vperm.slane %v88, 0
  %vm90 = vcmask 64512
  %v92 = vsel %vm90, %v85, 0
  %v95 = vsel %vm90, %v86, 0
  %97 = vmatpush.msra.mxu0 0.0
  %98 = vmatpush.msra.mxu0 0.0
  %99 = vmatpush.msra.mxu0 0.0
  %100 = vmatpush.msra.mxu0 0.0
  %101 = vmatpush.msra.mxu0 0.0
  %102 = vmatpush.msra.mxu0 0.0
  %103 = vmatpush.msra.mxu0 0.0
  %104 = vmatpush.msra.mxu0 0.0
  %105 = vmatpush.msra.mxu0 0.0
  %106 = vmatpush.msra.mxu0 0.0
  %107 = vmatpush.msra.mxu0 0.0
  %108 = vmatpush.msra.mxu0 0.0
  %109 = vmatpush.msra.mxu0 0.0
  %110 = vmatpush.msra.mxu0 0.0
  %111 = vmatpush.msra.mxu0 0.0
  %112 = vmatpush.msra.mxu0 %v87
  %113 = vmatmul.f32.gmra.mxu0 %v92
  %v114 = vpop.f32.mrf.mxu0
  %v115 = vadd.f32 %v89, %v114
  %116 = vmatmul.f32.gmra.mxu0 %v95
  %v117 = vpop.f32.mrf.mxu0
  %v118 = vadd.f32 %v89, %v117
  %119 = vdwg.mxu0
  %v120 = vmax.f32 %v115, 0.0
  %v121 = vmax.f32 %v118, 0.0
  %vm122 = vcmask 130048
  %v124 = vsel %vm122, %v77, 0
  %v127 = vsel %vm122, %v78, 0
  %v130 = vsel %vm122, %v79, 0
  %v133 = vsel %vm122, %v80, 0
  %135 = vmatpush.msra.mxu0 0.0
  %136 = vmatpush.msra.mxu0 0.0
  %137 = vmatpush.msra.mxu0 0.0
  %138 = vmatpush.msra.mxu0 0.0
  %139 = vmatpush.msra.mxu0 0.0
  %140 = vmatpush.msra.mxu0 0.0
  %141 = vmatpush.msra.mxu0 0.0
  %142 = vmatpush.msra.mxu0 0.0
  %143 = vmatpush.msra.mxu0 0.0
  %144 = vmatpush.msra.mxu0 0.0
  %145 = vmatpush.msra.mxu0 0.0
  %146 = vmatpush.msra.mxu0 0.0
  %147 = vmatpush.msra.mxu0 0.0
  %148 = vmatpush.msra.mxu0 0.0
  %149 = vmatpush.msra.mxu0 %v121
  %150 = vmatpush.msra.mxu0 %v120
  %151 = vmatmul.f32.gmra.mxu0 %v124
  %v152 = vpop.f32.mrf.mxu0
  %v153 = vadd.f32 0.0, %v152
  %154 = vmatmul.f32.gmra.mxu0 %v127
  %v155 = vpop.f32.mrf.mxu0
  %v156 = vadd.f32 0.0, %v155
  %157 = vmatmul.f32.gmra.mxu0 %v130
  %v158 = vpop.f32.mrf.mxu0
  %v159 = vadd.f32 0.0, %v158
  %160 = vmatmul.f32.gmra.mxu0 %v133
  %v161 = vpop.f32.mrf.mxu0
  %v162 = vadd.f32 0.0, %v161
  %163 = vdwg.mxu0
  %v165 = vsel %vm122, %v49, 0
  %v168 = vsel %vm122, %v50, 0
  %v171 = vsel %vm122, %v51, 0
  %v174 = vsel %vm122, %v52, 0
  %176 = vmatpush.msra.mxu0 0.0
  %177 = vmatpush.msra.mxu0 0.0
  %178 = vmatpush.msra.mxu0 0.0
  %179 = vmatpush.msra.mxu0 0.0
  %180 = vmatpush.msra.mxu0 0.0
  %181 = vmatpush.msra.mxu0 0.0
  %182 = vmatpush.msra.mxu0 0.0
  %183 = vmatpush.msra.mxu0 0.0
  %184 = vmatpush.msra.mxu0 0.0
  %185 = vmatpush.msra.mxu0 0.0
  %186 = vmatpush.msra.mxu0 0.0
  %187 = vmatpush.msra.mxu0 0.0
  %188 = vmatpush.msra.mxu0 0.0
  %189 = vmatpush.msra.mxu0 0.0
  %190 = vmatpush.msra.mxu0 %v121
  %191 = vmatpush.msra.mxu0 %v120
  %192 = vmatmul.f32.gmra.mxu0 %v165
  %v193 = vpop.f32.mrf.mxu0
  %v194 = vadd.f32 0.0, %v193
  %195 = vmatmul.f32.gmra.mxu0 %v168
  %v196 = vpop.f32.mrf.mxu0
  %v197 = vadd.f32 0.0, %v196
  %198 = vmatmul.f32.gmra.mxu0 %v171
  %v199 = vpop.f32.mrf.mxu0
  %v200 = vadd.f32 0.0, %v199
  %201 = vmatmul.f32.gmra.mxu0 %v174
  %v202 = vpop.f32.mrf.mxu0
  %v203 = vadd.f32 0.0, %v202
  %204 = vdwg.mxu0
  %v205 = vld [vmem:[%s4 + $0x8] sm:$0xff]
  %v206 = vld [vmem:[%s4 + $0x10] sm:$0xff]
  %v207 = vld [vmem:[%s4 + $0x18] sm:$0xff]
  %v208 = vld [vmem:[%s4 + $0x20] sm:$0xff]
  %v209 = vld [vmem:[%s4 + $0x28] sm:$0xff]
  %v210 = vld [vmem:[%s4 + $0x30] sm:$0xff]
  %v211 = vld [vmem:[%s4 + $0x38] sm:$0xff]
  %v212 = vld [vmem:[%s4 + $0x40] sm:$0xff]
  %vm213 = vcmask 261120
  %v215 = vsel %vm213, %v194, 0
  %v218 = vsel %vm213, %v197, 0
  %v221 = vsel %vm213, %v200, 0
  %v224 = vsel %vm213, %v203, 0
  %226 = vmatpush.msra.mxu0 0.0
  %227 = vmatpush.msra.mxu0 0.0
  %228 = vmatpush.msra.mxu0 0.0
  %229 = vmatpush.msra.mxu0 0.0
  %230 = vmatpush.msra.mxu0 0.0
  %231 = vmatpush.msra.mxu0 0.0
  %232 = vmatpush.msra.mxu0 0.0
  %233 = vmatpush.msra.mxu0 0.0
  %234 = vmatpush.msra.mxu0 0.0
  %235 = vmatpush.msra.mxu0 0.0
  %236 = vmatpush.msra.mxu0 0.0
  %237 = vmatpush.msra.mxu0 0.0
  %238 = vmatpush.msra.mxu0 %v212
  %239 = vmatpush.msra.mxu0 %v211
  %240 = vmatpush.msra.mxu0 %v210
  %241 = vmatpush.msra.mxu0 %v209
  %242 = vmatmul.f32.gmra.mxu0 %v215
  %v243 = vpop.f32.mrf.mxu0
  %v244 = vadd.f32 0.0, %v243
  %245 = vmatmul.f32.gmra.mxu0 %v218
  %v246 = vpop.f32.mrf.mxu0
  %v247 = vadd.f32 0.0, %v246
  %248 = vmatmul.f32.gmra.mxu0 %v221
  %v249 = vpop.f32.mrf.mxu0
  %v250 = vadd.f32 0.0, %v249
  %251 = vmatmul.f32.gmra.mxu0 %v224
  %v252 = vpop.f32.mrf.mxu0
  %v253 = vadd.f32 0.0, %v252
  %254 = vdwg.mxu0
  %v256 = vsel %vm213, %v153, 0
  %v259 = vsel %vm213, %v156, 0
  %v262 = vsel %vm213, %v159, 0
  %v265 = vsel %vm213, %v162, 0
  %267 = vmatpush.msra.mxu0 0.0
  %268 = vmatpush.msra.mxu0 0.0
  %269 = vmatpush.msra.mxu0 0.0
  %270 = vmatpush.msra.mxu0 0.0
  %271 = vmatpush.msra.mxu0 0.0
  %272 = vmatpush.msra.mxu0 0.0
  %273 = vmatpush.msra.mxu0 0.0
  %274 = vmatpush.msra.mxu0 0.0
  %275 = vmatpush.msra.mxu0 0.0
  %276 = vmatpush.msra.mxu0 0.0
  %277 = vmatpush.msra.mxu0 0.0
  %278 = vmatpush.msra.mxu0 0.0
  %279 = vmatpush.msra.mxu0 %v208
  %280 = vmatpush.msra.mxu0 %v207
  %281 = vmatpush.msra.mxu0 %v206
  %282 = vmatpush.msra.mxu0 %v205
  %283 = vmatmul.f32.gmra.mxu0 %v256
  %v284 = vpop.f32.mrf.mxu0
  %v285 = vadd.f32 %v244, %v284
  %286 = vmatmul.f32.gmra.mxu0 %v259
  %v287 = vpop.f32.mrf.mxu0
  %v288 = vadd.f32 %v247, %v287
  %289 = vmatmul.f32.gmra.mxu0 %v262
  %v290 = vpop.f32.mrf.mxu0
  %v291 = vadd.f32 %v250, %v290
  %292 = vmatmul.f32.gmra.mxu0 %v265
  %v293 = vpop.f32.mrf.mxu0
  %v294 = vadd.f32 %v253, %v293
  %295 = vdwg.mxu0
  %v296 = vld [vmem:[%s4 + $0x48] sm:$0xf]
  %vm297 = vcmask 31744
  %v299 = vsel %vm297, %v81, 0
  %v302 = vsel %vm297, %v82, 0
  %v305 = vsel %vm297, %v83, 0
  %v308 = vsel %vm297, %v84, 0
  %vm310 = vcmask 1043456
  %v312 = vsel %vm310, %v296, 0
  %314 = vmatpush.msra.mxu0 0.0
  %315 = vmatpush.msra.mxu0 0.0
  %316 = vmatpush.msra.mxu0 0.0
  %317 = vmatpush.msra.mxu0 0.0
  %318 = vmatpush.msra.mxu0 0.0
  %319 = vmatpush.msra.mxu0 0.0
  %320 = vmatpush.msra.mxu0 0.0
  %321 = vmatpush.msra.mxu0 0.0
  %322 = vmatpush.msra.mxu0 0.0
  %323 = vmatpush.msra.mxu0 0.0
  %324 = vmatpush.msra.mxu0 0.0
  %325 = vmatpush.msra.mxu0 0.0
  %326 = vmatpush.msra.mxu0 0.0
  %327 = vmatpush.msra.mxu0 0.0
  %328 = vmatpush.msra.mxu0 0.0
  %329 = vmatpush.msra.mxu0 %v312
  %330 = vmatmul.f32.gmra.mxu0 %v299
  %v331 = vpop.f32.mrf.mxu0
  %v332 = vadd.f32 0.0, %v331
  %333 = vmatmul.f32.gmra.mxu0 %v302
  %v334 = vpop.f32.mrf.mxu0
  %v335 = vadd.f32 0.0, %v334
  %336 = vmatmul.f32.gmra.mxu0 %v305
  %v337 = vpop.f32.mrf.mxu0
  %v338 = vadd.f32 0.0, %v337
  %339 = vmatmul.f32.gmra.mxu0 %v308
  %v340 = vpop.f32.mrf.mxu0
  %v341 = vadd.f32 0.0, %v340
  %342 = vdwg.mxu0
  %v343 = vadd.f32 %v285, %v332
  %v344 = vadd.f32 %v288, %v335
  %v345 = vadd.f32 %v291, %v338
  %v346 = vadd.f32 %v294, %v341
  %v347 = vld [vmem:[%s5 + $0x8] sm:$0x1]
  %v348 = vperm.slane %v347, 0
  %v349 = vadd.f32 %v343, %v348
  %v350 = vadd.f32 %v344, %v348
  %v351 = vadd.f32 %v345, %v348
  %v352 = vadd.f32 %v346, %v348
  %v353 = vsub.f32 0.0, %v349
  %v354 = vsub.f32 0.0, %v350
  %v355 = vsub.f32 0.0, %v351
  %v356 = vsub.f32 0.0, %v352
  %v357 = vmul.f32 %v353, 1.442695
  %v358 = vpow.pop %v357
  %v359 = vmul.f32 %v354, 1.442695
  %v360 = vpow.pop %v359
  %v361 = vmul.f32 %v355, 1.442695
  %v362 = vpow.pop %v361
  %v363 = vmul.f32 %v356, 1.442695
  %v364 = vpow.pop %v363
  %v365 = vadd.f32 %v358, 1.0
  %v366 = vadd.f32 %v360, 1.0
  %v367 = vadd.f32 %v362, 1.0
  %v368 = vadd.f32 %v364, 1.0
  %v369 = vrcp.pop %v365
  %v370 = vmul.f32 %v365, %v369
  %v371 = vsub.f32 1.0, %v370
  %v372 = vmul.f32 %v369, %v371
  %v373 = vadd.f32 %v369, %v372
  %vm374 = vweird.f32 %v365
  %vm375 = vweird.f32 %v369
  %vm376 = vmor %vm374, %vm375
  %v377 = vsel %vm376, %v369, %v373
  %v378 = vand.u32 2147483647, %v365
  %vm379 = vcmp.eq.f32.partialorder %v378, 8.507059e+37
  %v380 = vand.u32 %v365, 2147483648
  %v381 = vor.u32 1.1754944e-38, %v380
  %v382 = vsel %vm379, %v381, %v377
  %v383 = vmul.f32 1.0, %v382
  %v384 = vrcp.pop %v366
  %v385 = vmul.f32 %v366, %v384
  %v386 = vsub.f32 1.0, %v385
  %v387 = vmul.f32 %v384, %v386
  %v388 = vadd.f32 %v384, %v387
  %vm389 = vweird.f32 %v366
  %vm390 = vweird.f32 %v384
  %vm391 = vmor %vm389, %vm390
  %v392 = vsel %vm391, %v384, %v388
  %v393 = vand.u32 2147483647, %v366
  %vm394 = vcmp.eq.f32.partialorder %v393, 8.507059e+37
  %v395 = vand.u32 %v366, 2147483648
  %v396 = vor.u32 1.1754944e-38, %v395
  %v397 = vsel %vm394, %v396, %v392
  %v398 = vmul.f32 1.0, %v397
  %v399 = vrcp.pop %v367
  %v400 = vmul.f32 %v367, %v399
  %v401 = vsub.f32 1.0, %v400
  %v402 = vmul.f32 %v399, %v401
  %v403 = vadd.f32 %v399, %v402
  %vm404 = vweird.f32 %v367
  %vm405 = vweird.f32 %v399
  %vm406 = vmor %vm404, %vm405
  %v407 = vsel %vm406, %v399, %v403
  %v408 = vand.u32 2147483647, %v367
  %vm409 = vcmp.eq.f32.partialorder %v408, 8.507059e+37
  %v410 = vand.u32 %v367, 2147483648
  %v411 = vor.u32 1.1754944e-38, %v410
  %v412 = vsel %vm409, %v411, %v407
  %v413 = vmul.f32 1.0, %v412
  %v414 = vrcp.pop %v368
  %v415 = vmul.f32 %v368, %v414
  %v416 = vsub.f32 1.0, %v415
  %v417 = vmul.f32 %v414, %v416
  %v418 = vadd.f32 %v414, %v417
  %vm419 = vweird.f32 %v368
  %vm420 = vweird.f32 %v414
  %vm421 = vmor %vm419, %vm420
  %v422 = vsel %vm421, %v414, %v418
  %v423 = vand.u32 2147483647, %v368
  %vm424 = vcmp.eq.f32.partialorder %v423, 8.507059e+37
  %v425 = vand.u32 %v368, 2147483648
  %v426 = vor.u32 1.1754944e-38, %v425
  %v427 = vsel %vm424, %v426, %v422
  %v428 = vmul.f32 1.0, %v427
  %v429 = vmax.f32 %v349, 0.0
  %v430 = vmax.f32 %v350, 0.0
  %v431 = vmax.f32 %v351, 0.0
  %v432 = vmax.f32 %v352, 0.0
  %v433 = vand.u32 2147483647, %v349
  %v434 = vand.u32 2147483647, %v350
  %v435 = vand.u32 2147483647, %v351
  %v436 = vand.u32 2147483647, %v352
  %v437 = vsub.f32 0.0, %v433
  %v438 = vsub.f32 0.0, %v434
  %v439 = vsub.f32 0.0, %v435
  %v440 = vsub.f32 0.0, %v436
  %v441 = vmul.f32 %v437, 1.442695
  %v442 = vpow.pop %v441
  %v443 = vmul.f32 %v438, 1.442695
  %v444 = vpow.pop %v443
  %v445 = vmul.f32 %v439, 1.442695
  %v446 = vpow.pop %v445
  %v447 = vmul.f32 %v440, 1.442695
  %v448 = vpow.pop %v447
  %v449 = vadd.f32 %v442, 1.0
  %v450 = vadd.f32 %v444, 1.0
  %v451 = vadd.f32 %v446, 1.0
  %v452 = vadd.f32 %v448, 1.0
  %v453 = vlog2.pop %v449
  %v454 = vmul.f32 %v453, 0.6931472
  %v455 = vlog2.pop %v450
  %v456 = vmul.f32 %v455, 0.6931472
  %v457 = vlog2.pop %v451
  %v458 = vmul.f32 %v457, 0.6931472
  %v459 = vlog2.pop %v452
  %v460 = vmul.f32 %v459, 0.6931472
  %v461 = vadd.f32 %v429, %v454
  %v462 = vadd.f32 %v430, %v456
  %v463 = vadd.f32 %v431, %v458
  %v464 = vadd.f32 %v432, %v460
  %469 = vrot.lane.b32.xlu0 %v461, 96
  %v470 = vpop.permute.xlu0 %469
  %471 = vrot.lane.b32.xlu0 %v462, 96
  %v472 = vpop.permute.xlu0 %471
  %473 = vrot.lane.b32.xlu0 %v463, 96
  %v474 = vpop.permute.xlu0 %473
  %475 = vrot.lane.b32.xlu0 %v464, 96
  %v476 = vpop.permute.xlu0 %475
  %v481 = vmul.f32 %v383, %v470
  %v482 = vmul.f32 %v398, %v472
  %v483 = vmul.f32 %v413, %v474
  %v484 = vmul.f32 %v428, %v476
  %485 = vxpose.xlu0.b32.start [1/16] %v77, 128
  %486 = vxpose.xlu0.b32.cont [2/16] %v78, 128
  %487 = vxpose.xlu0.b32.cont [3/16] %v79, 128
  %488 = vxpose.xlu0.b32.cont [4/16] %v80, 128
  %489 = vxpose.xlu0.b32.cont [5/16] 0.0, 128
  %490 = vxpose.xlu0.b32.cont [6/16] 0.0, 128
  %491 = vxpose.xlu0.b32.cont [7/16] 0.0, 128
  %492 = vxpose.xlu0.b32.cont [8/16] 0.0, 128
  %493 = vxpose.xlu0.b32.cont [9/16] 0.0, 128
  %494 = vxpose.xlu0.b32.cont [10/16] 0.0, 128
  %495 = vxpose.xlu0.b32.cont [11/16] 0.0, 128
  %496 = vxpose.xlu0.b32.cont [12/16] 0.0, 128
  %497 = vxpose.xlu0.b32.cont [13/16] 0.0, 128
  %498 = vxpose.xlu0.b32.cont [14/16] 0.0, 128
  %499 = vxpose.xlu0.b32.cont [15/16] 0.0, 128
  %500 = vxpose.xlu0.b32.end [16/16] 0.0, 128
  %v501 = vpop.trf.xlu0
  %v502 = vpop.trf.xlu0
  %v503 = vpop.trf.xlu0
  %v504 = vpop.trf.xlu0
  %v505 = vpop.trf.xlu0
  %v506 = vpop.trf.xlu0
  %v507 = vpop.trf.xlu0
  %v508 = vpop.trf.xlu0
  %v509 = vpop.trf.xlu0
  %v510 = vpop.trf.xlu0
  %v511 = vpop.trf.xlu0
  %v512 = vpop.trf.xlu0
  %v513 = vpop.trf.xlu0
  %v514 = vpop.trf.xlu0
  %v515 = vpop.trf.xlu0
  %v516 = vpop.trf.xlu0
  %v518 = vsel %vm213, %v501, 0
  %v521 = vsel %vm213, %v502, 0
  %523 = vmatpush.msra.mxu0 0.0
  %524 = vmatpush.msra.mxu0 0.0
  %525 = vmatpush.msra.mxu0 0.0
  %526 = vmatpush.msra.mxu0 0.0
  %527 = vmatpush.msra.mxu0 0.0
  %528 = vmatpush.msra.mxu0 0.0
  %529 = vmatpush.msra.mxu0 0.0
  %530 = vmatpush.msra.mxu0 0.0
  %531 = vmatpush.msra.mxu0 0.0
  %532 = vmatpush.msra.mxu0 0.0
  %533 = vmatpush.msra.mxu0 0.0
  %534 = vmatpush.msra.mxu0 0.0
  %535 = vmatpush.msra.mxu0 %v484
  %536 = vmatpush.msra.mxu0 %v483
  %537 = vmatpush.msra.mxu0 %v482
  %538 = vmatpush.msra.mxu0 %v481
  %539 = vmatmul.f32.gmra.mxu0 %v518
  %v540 = vpop.f32.mrf.mxu0
  %v541 = vadd.f32 0.0, %v540
  %542 = vmatmul.f32.gmra.mxu0 %v521
  %v543 = vpop.f32.mrf.mxu0
  %v544 = vadd.f32 0.0, %v543
  %545 = vdwg.mxu0
  %v546 = vadd.f32 %v120, %v541
  %v547 = vadd.f32 %v121, %v544
  %v548 = vld [vmem:[%s4 + $0x50] sm:$0xff]
  %v549 = vld [vmem:[%s4 + $0x58] sm:$0xff]
  %v550 = vld [vmem:[%s4 + $0x60] sm:$0xff]
  %v551 = vld [vmem:[%s4 + $0x68] sm:$0xff]
  %v552 = vld [vmem:[%s5 + $0x10] sm:$0x1]
  %v553 = vperm.slane %v552, 0
  %v555 = vsel %vm213, %v546, 0
  %v558 = vsel %vm213, %v547, 0
  %560 = vmatpush.msra.mxu0 0.0
  %561 = vmatpush.msra.mxu0 0.0
  %562 = vmatpush.msra.mxu0 0.0
  %563 = vmatpush.msra.mxu0 0.0
  %564 = vmatpush.msra.mxu0 0.0
  %565 = vmatpush.msra.mxu0 0.0
  %566 = vmatpush.msra.mxu0 0.0
  %567 = vmatpush.msra.mxu0 0.0
  %568 = vmatpush.msra.mxu0 0.0
  %569 = vmatpush.msra.mxu0 0.0
  %570 = vmatpush.msra.mxu0 0.0
  %571 = vmatpush.msra.mxu0 0.0
  %572 = vmatpush.msra.mxu0 %v551
  %573 = vmatpush.msra.mxu0 %v550
  %574 = vmatpush.msra.mxu0 %v549
  %575 = vmatpush.msra.mxu0 %v548
  %576 = vmatmul.f32.gmra.mxu0 %v555
  %v577 = vpop.f32.mrf.mxu0
  %v578 = vadd.f32 %v553, %v577
  %579 = vmatmul.f32.gmra.mxu0 %v558
  %v580 = vpop.f32.mrf.mxu0
  %v581 = vadd.f32 %v553, %v580
  %582 = vdwg.mxu0
  %v583 = vmax.f32 %v578, 0.0
  %v584 = vmax.f32 %v581, 0.0
  %585 = vmatpush.msra.mxu0 0.0
  %586 = vmatpush.msra.mxu0 0.0
  %587 = vmatpush.msra.mxu0 0.0
  %588 = vmatpush.msra.mxu0 0.0
  %589 = vmatpush.msra.mxu0 0.0
  %590 = vmatpush.msra.mxu0 0.0
  %591 = vmatpush.msra.mxu0 0.0
  %592 = vmatpush.msra.mxu0 0.0
  %593 = vmatpush.msra.mxu0 0.0
  %594 = vmatpush.msra.mxu0 0.0
  %595 = vmatpush.msra.mxu0 0.0
  %596 = vmatpush.msra.mxu0 0.0
  %597 = vmatpush.msra.mxu0 0.0
  %598 = vmatpush.msra.mxu0 0.0
  %599 = vmatpush.msra.mxu0 %v584
  %600 = vmatpush.msra.mxu0 %v583
  %601 = vmatmul.f32.gmra.mxu0 %v124
  %v602 = vpop.f32.mrf.mxu0
  %v603 = vadd.f32 0.0, %v602
  %604 = vmatmul.f32.gmra.mxu0 %v127
  %v605 = vpop.f32.mrf.mxu0
  %v606 = vadd.f32 0.0, %v605
  %607 = vmatmul.f32.gmra.mxu0 %v130
  %v608 = vpop.f32.mrf.mxu0
  %v609 = vadd.f32 0.0, %v608
  %610 = vmatmul.f32.gmra.mxu0 %v133
  %v611 = vpop.f32.mrf.mxu0
  %v612 = vadd.f32 0.0, %v611
  %613 = vdwg.mxu0
  %614 = vmatpush.msra.mxu0 0.0
  %615 = vmatpush.msra.mxu0 0.0
  %616 = vmatpush.msra.mxu0 0.0
  %617 = vmatpush.msra.mxu0 0.0
  %618 = vmatpush.msra.mxu0 0.0
  %619 = vmatpush.msra.mxu0 0.0
  %620 = vmatpush.msra.mxu0 0.0
  %621 = vmatpush.msra.mxu0 0.0
  %622 = vmatpush.msra.mxu0 0.0
  %623 = vmatpush.msra.mxu0 0.0
  %624 = vmatpush.msra.mxu0 0.0
  %625 = vmatpush.msra.mxu0 0.0
  %626 = vmatpush.msra.mxu0 0.0
  %627 = vmatpush.msra.mxu0 0.0
  %628 = vmatpush.msra.mxu0 %v584
  %629 = vmatpush.msra.mxu0 %v583
  %630 = vmatmul.f32.gmra.mxu0 %v165
  %v631 = vpop.f32.mrf.mxu0
  %v632 = vadd.f32 0.0, %v631
  %633 = vmatmul.f32.gmra.mxu0 %v168
  %v634 = vpop.f32.mrf.mxu0
  %v635 = vadd.f32 0.0, %v634
  %636 = vmatmul.f32.gmra.mxu0 %v171
  %v637 = vpop.f32.mrf.mxu0
  %v638 = vadd.f32 0.0, %v637
  %639 = vmatmul.f32.gmra.mxu0 %v174
  %v640 = vpop.f32.mrf.mxu0
  %v641 = vadd.f32 0.0, %v640
  %642 = vdwg.mxu0
  %v643 = vld [vmem:[%s4 + $0x70] sm:$0xff]
  %v644 = vld [vmem:[%s4 + $0x78] sm:$0xff]
  %v645 = vld [vmem:[%s4 + $0x80] sm:$0xff]
  %v646 = vld [vmem:[%s4 + $0x88] sm:$0xff]
  %v647 = vld [vmem:[%s4 + $0x90] sm:$0xff]
  %v648 = vld [vmem:[%s4 + $0x98] sm:$0xff]
  %v649 = vld [vmem:[%s4 + $0xa0] sm:$0xff]
  %v650 = vld [vmem:[%s4 + $0xa8] sm:$0xff]
  %v652 = vsel %vm213, %v632, 0
  %v655 = vsel %vm213, %v635, 0
  %v658 = vsel %vm213, %v638, 0
  %v661 = vsel %vm213, %v641, 0
  %663 = vmatpush.msra.mxu0 0.0
  %664 = vmatpush.msra.mxu0 0.0
  %665 = vmatpush.msra.mxu0 0.0
  %666 = vmatpush.msra.mxu0 0.0
  %667 = vmatpush.msra.mxu0 0.0
  %668 = vmatpush.msra.mxu0 0.0
  %669 = vmatpush.msra.mxu0 0.0
  %670 = vmatpush.msra.mxu0 0.0
  %671 = vmatpush.msra.mxu0 0.0
  %672 = vmatpush.msra.mxu0 0.0
  %673 = vmatpush.msra.mxu0 0.0
  %674 = vmatpush.msra.mxu0 0.0
  %675 = vmatpush.msra.mxu0 %v650
  %676 = vmatpush.msra.mxu0 %v649
  %677 = vmatpush.msra.mxu0 %v648
  %678 = vmatpush.msra.mxu0 %v647
  %679 = vmatmul.f32.gmra.mxu0 %v652
  %v680 = vpop.f32.mrf.mxu0
  %v681 = vadd.f32 0.0, %v680
  %682 = vmatmul.f32.gmra.mxu0 %v655
  %v683 = vpop.f32.mrf.mxu0
  %v684 = vadd.f32 0.0, %v683
  %685 = vmatmul.f32.gmra.mxu0 %v658
  %v686 = vpop.f32.mrf.mxu0
  %v687 = vadd.f32 0.0, %v686
  %688 = vmatmul.f32.gmra.mxu0 %v661
  %v689 = vpop.f32.mrf.mxu0
  %v690 = vadd.f32 0.0, %v689
  %691 = vdwg.mxu0
  %v693 = vsel %vm213, %v603, 0
  %v696 = vsel %vm213, %v606, 0
  %v699 = vsel %vm213, %v609, 0
  %v702 = vsel %vm213, %v612, 0
  %704 = vmatpush.msra.mxu0 0.0
  %705 = vmatpush.msra.mxu0 0.0
  %706 = vmatpush.msra.mxu0 0.0
  %707 = vmatpush.msra.mxu0 0.0
  %708 = vmatpush.msra.mxu0 0.0
  %709 = vmatpush.msra.mxu0 0.0
  %710 = vmatpush.msra.mxu0 0.0
  %711 = vmatpush.msra.mxu0 0.0
  %712 = vmatpush.msra.mxu0 0.0
  %713 = vmatpush.msra.mxu0 0.0
  %714 = vmatpush.msra.mxu0 0.0
  %715 = vmatpush.msra.mxu0 0.0
  %716 = vmatpush.msra.mxu0 %v646
  %717 = vmatpush.msra.mxu0 %v645
  %718 = vmatpush.msra.mxu0 %v644
  %719 = vmatpush.msra.mxu0 %v643
  %720 = vmatmul.f32.gmra.mxu0 %v693
  %v721 = vpop.f32.mrf.mxu0
  %v722 = vadd.f32 %v681, %v721
  %723 = vmatmul.f32.gmra.mxu0 %v696
  %v724 = vpop.f32.mrf.mxu0
  %v725 = vadd.f32 %v684, %v724
  %726 = vmatmul.f32.gmra.mxu0 %v699
  %v727 = vpop.f32.mrf.mxu0
  %v728 = vadd.f32 %v687, %v727
  %729 = vmatmul.f32.gmra.mxu0 %v702
  %v730 = vpop.f32.mrf.mxu0
  %v731 = vadd.f32 %v690, %v730
  %732 = vdwg.mxu0
  %v733 = vld [vmem:[%s4 + $0xb0] sm:$0xf]
  %v735 = vsel %vm310, %v733, 0
  %737 = vmatpush.msra.mxu0 0.0
  %738 = vmatpush.msra.mxu0 0.0
  %739 = vmatpush.msra.mxu0 0.0
  %740 = vmatpush.msra.mxu0 0.0
  %741 = vmatpush.msra.mxu0 0.0
  %742 = vmatpush.msra.mxu0 0.0
  %743 = vmatpush.msra.mxu0 0.0
  %744 = vmatpush.msra.mxu0 0.0
  %745 = vmatpush.msra.mxu0 0.0
  %746 = vmatpush.msra.mxu0 0.0
  %747 = vmatpush.msra.mxu0 0.0
  %748 = vmatpush.msra.mxu0 0.0
  %749 = vmatpush.msra.mxu0 0.0
  %750 = vmatpush.msra.mxu0 0.0
  %751 = vmatpush.msra.mxu0 0.0
  %752 = vmatpush.msra.mxu0 %v735
  %753 = vmatmul.f32.gmra.mxu0 %v299
  %v754 = vpop.f32.mrf.mxu0
  %v755 = vadd.f32 0.0, %v754
  %756 = vmatmul.f32.gmra.mxu0 %v302
  %v757 = vpop.f32.mrf.mxu0
  %v758 = vadd.f32 0.0, %v757
  %759 = vmatmul.f32.gmra.mxu0 %v305
  %v760 = vpop.f32.mrf.mxu0
  %v761 = vadd.f32 0.0, %v760
  %762 = vmatmul.f32.gmra.mxu0 %v308
  %v763 = vpop.f32.mrf.mxu0
  %v764 = vadd.f32 0.0, %v763
  %765 = vdwg.mxu0
  %v766 = vadd.f32 %v722, %v755
  %v767 = vadd.f32 %v725, %v758
  %v768 = vadd.f32 %v728, %v761
  %v769 = vadd.f32 %v731, %v764
  %v770 = vld [vmem:[%s5 + $0x18] sm:$0x1]
  %v771 = vperm.slane %v770, 0
  %v772 = vadd.f32 %v766, %v771
  %v773 = vadd.f32 %v767, %v771
  %v774 = vadd.f32 %v768, %v771
  %v775 = vadd.f32 %v769, %v771
  %v776 = vsub.f32 0.0, %v772
  %v777 = vsub.f32 0.0, %v773
  %v778 = vsub.f32 0.0, %v774
  %v779 = vsub.f32 0.0, %v775
  %v780 = vmul.f32 %v776, 1.442695
  %v781 = vpow.pop %v780
  %v782 = vmul.f32 %v777, 1.442695
  %v783 = vpow.pop %v782
  %v784 = vmul.f32 %v778, 1.442695
  %v785 = vpow.pop %v784
  %v786 = vmul.f32 %v779, 1.442695
  %v787 = vpow.pop %v786
  %v788 = vadd.f32 %v781, 1.0
  %v789 = vadd.f32 %v783, 1.0
  %v790 = vadd.f32 %v785, 1.0
  %v791 = vadd.f32 %v787, 1.0
  %v792 = vrcp.pop %v788
  %v793 = vmul.f32 %v788, %v792
  %v794 = vsub.f32 1.0, %v793
  %v795 = vmul.f32 %v792, %v794
  %v796 = vadd.f32 %v792, %v795
  %vm797 = vweird.f32 %v788
  %vm798 = vweird.f32 %v792
  %vm799 = vmor %vm797, %vm798
  %v800 = vsel %vm799, %v792, %v796
  %v801 = vand.u32 2147483647, %v788
  %vm802 = vcmp.eq.f32.partialorder %v801, 8.507059e+37
  %v803 = vand.u32 %v788, 2147483648
  %v804 = vor.u32 1.1754944e-38, %v803
  %v805 = vsel %vm802, %v804, %v800
  %v806 = vmul.f32 1.0, %v805
  %v807 = vrcp.pop %v789
  %v808 = vmul.f32 %v789, %v807
  %v809 = vsub.f32 1.0, %v808
  %v810 = vmul.f32 %v807, %v809
  %v811 = vadd.f32 %v807, %v810
  %vm812 = vweird.f32 %v789
  %vm813 = vweird.f32 %v807
  %vm814 = vmor %vm812, %vm813
  %v815 = vsel %vm814, %v807, %v811
  %v816 = vand.u32 2147483647, %v789
  %vm817 = vcmp.eq.f32.partialorder %v816, 8.507059e+37
  %v818 = vand.u32 %v789, 2147483648
  %v819 = vor.u32 1.1754944e-38, %v818
  %v820 = vsel %vm817, %v819, %v815
  %v821 = vmul.f32 1.0, %v820
  %v822 = vrcp.pop %v790
  %v823 = vmul.f32 %v790, %v822
  %v824 = vsub.f32 1.0, %v823
  %v825 = vmul.f32 %v822, %v824
  %v826 = vadd.f32 %v822, %v825
  %vm827 = vweird.f32 %v790
  %vm828 = vweird.f32 %v822
  %vm829 = vmor %vm827, %vm828
  %v830 = vsel %vm829, %v822, %v826
  %v831 = vand.u32 2147483647, %v790
  %vm832 = vcmp.eq.f32.partialorder %v831, 8.507059e+37
  %v833 = vand.u32 %v790, 2147483648
  %v834 = vor.u32 1.1754944e-38, %v833
  %v835 = vsel %vm832, %v834, %v830
  %v836 = vmul.f32 1.0, %v835
  %v837 = vrcp.pop %v791
  %v838 = vmul.f32 %v791, %v837
  %v839 = vsub.f32 1.0, %v838
  %v840 = vmul.f32 %v837, %v839
  %v841 = vadd.f32 %v837, %v840
  %vm842 = vweird.f32 %v791
  %vm843 = vweird.f32 %v837
  %vm844 = vmor %vm842, %vm843
  %v845 = vsel %vm844, %v837, %v841
  %v846 = vand.u32 2147483647, %v791
  %vm847 = vcmp.eq.f32.partialorder %v846, 8.507059e+37
  %v848 = vand.u32 %v791, 2147483648
  %v849 = vor.u32 1.1754944e-38, %v848
  %v850 = vsel %vm847, %v849, %v845
  %v851 = vmul.f32 1.0, %v850
  %v852 = vmax.f32 %v772, 0.0
  %v853 = vmax.f32 %v773, 0.0
  %v854 = vmax.f32 %v774, 0.0
  %v855 = vmax.f32 %v775, 0.0
  %v856 = vand.u32 2147483647, %v772
  %v857 = vand.u32 2147483647, %v773
  %v858 = vand.u32 2147483647, %v774
  %v859 = vand.u32 2147483647, %v775
  %v860 = vsub.f32 0.0, %v856
  %v861 = vsub.f32 0.0, %v857
  %v862 = vsub.f32 0.0, %v858
  %v863 = vsub.f32 0.0, %v859
  %v864 = vmul.f32 %v860, 1.442695
  %v865 = vpow.pop %v864
  %v866 = vmul.f32 %v861, 1.442695
  %v867 = vpow.pop %v866
  %v868 = vmul.f32 %v862, 1.442695
  %v869 = vpow.pop %v868
  %v870 = vmul.f32 %v863, 1.442695
  %v871 = vpow.pop %v870
  %v872 = vadd.f32 %v865, 1.0
  %v873 = vadd.f32 %v867, 1.0
  %v874 = vadd.f32 %v869, 1.0
  %v875 = vadd.f32 %v871, 1.0
  %v876 = vlog2.pop %v872
  %v877 = vmul.f32 %v876, 0.6931472
  %v878 = vlog2.pop %v873
  %v879 = vmul.f32 %v878, 0.6931472
  %v880 = vlog2.pop %v874
  %v881 = vmul.f32 %v880, 0.6931472
  %v882 = vlog2.pop %v875
  %v883 = vmul.f32 %v882, 0.6931472
  %v884 = vadd.f32 %v852, %v877
  %v885 = vadd.f32 %v853, %v879
  %v886 = vadd.f32 %v854, %v881
  %v887 = vadd.f32 %v855, %v883
  %892 = vrot.lane.b32.xlu0 %v884, 96
  %v893 = vpop.permute.xlu0 %892
  %894 = vrot.lane.b32.xlu0 %v885, 96
  %v895 = vpop.permute.xlu0 %894
  %896 = vrot.lane.b32.xlu0 %v886, 96
  %v897 = vpop.permute.xlu0 %896
  %898 = vrot.lane.b32.xlu0 %v887, 96
  %v899 = vpop.permute.xlu0 %898
  %v904 = vmul.f32 %v806, %v893
  %v905 = vmul.f32 %v821, %v895
  %v906 = vmul.f32 %v836, %v897
  %v907 = vmul.f32 %v851, %v899
  %908 = vmatpush.msra.mxu0 0.0
  %909 = vmatpush.msra.mxu0 0.0
  %910 = vmatpush.msra.mxu0 0.0
  %911 = vmatpush.msra.mxu0 0.0
  %912 = vmatpush.msra.mxu0 0.0
  %913 = vmatpush.msra.mxu0 0.0
  %914 = vmatpush.msra.mxu0 0.0
  %915 = vmatpush.msra.mxu0 0.0
  %916 = vmatpush.msra.mxu0 0.0
  %917 = vmatpush.msra.mxu0 0.0
  %918 = vmatpush.msra.mxu0 0.0
  %919 = vmatpush.msra.mxu0 0.0
  %920 = vmatpush.msra.mxu0 %v907
  %921 = vmatpush.msra.mxu0 %v906
  %922 = vmatpush.msra.mxu0 %v905
  %923 = vmatpush.msra.mxu0 %v904
  %924 = vmatmul.f32.gmra.mxu0 %v518
  %v925 = vpop.f32.mrf.mxu0
  %v926 = vadd.f32 0.0, %v925
  %927 = vmatmul.f32.gmra.mxu0 %v521
  %v928 = vpop.f32.mrf.mxu0
  %v929 = vadd.f32 0.0, %v928
  %930 = vdwg.mxu0
  %v931 = vadd.f32 %v583, %v926
  %v932 = vadd.f32 %v584, %v929
  %v933 = vld [vmem:[%s4 + $0xb8] sm:$0xff]
  %v934 = vld [vmem:[%s4 + $0xc0] sm:$0xff]
  %v935 = vld [vmem:[%s4 + $0xc8] sm:$0xff]
  %v936 = vld [vmem:[%s4 + $0xd0] sm:$0xff]
  %v937 = vld [vmem:[%s5 + $0x20] sm:$0x1]
  %v938 = vperm.slane %v937, 0
  %v940 = vsel %vm213, %v931, 0
  %v943 = vsel %vm213, %v932, 0
  %945 = vmatpush.msra.mxu0 0.0
  %946 = vmatpush.msra.mxu0 0.0
  %947 = vmatpush.msra.mxu0 0.0
  %948 = vmatpush.msra.mxu0 0.0
  %949 = vmatpush.msra.mxu0 0.0
  %950 = vmatpush.msra.mxu0 0.0
  %951 = vmatpush.msra.mxu0 0.0
  %952 = vmatpush.msra.mxu0 0.0
  %953 = vmatpush.msra.mxu0 0.0
  %954 = vmatpush.msra.mxu0 0.0
  %955 = vmatpush.msra.mxu0 0.0
  %956 = vmatpush.msra.mxu0 0.0
  %957 = vmatpush.msra.mxu0 %v936
  %958 = vmatpush.msra.mxu0 %v935
  %959 = vmatpush.msra.mxu0 %v934
  %960 = vmatpush.msra.mxu0 %v933
  %961 = vmatmul.f32.gmra.mxu0 %v940
  %v962 = vpop.f32.mrf.mxu0
  %v963 = vadd.f32 %v938, %v962
  %964 = vmatmul.f32.gmra.mxu0 %v943
  %v965 = vpop.f32.mrf.mxu0
  %v966 = vadd.f32 %v938, %v965
  %967 = vdwg.mxu0
  %v968 = vmax.f32 %v963, 0.0
  %v969 = vmax.f32 %v966, 0.0
  %v970 = vld [vmem:[%s4 + $0xd8] sm:$0xff]
  %v971 = vld [vmem:[%s4 + $0xe0] sm:$0xff]
  %v972 = vld [vmem:[%s4 + $0xe8] sm:$0xff]
  %v973 = vld [vmem:[%s4 + $0xf0] sm:$0xff]
  %v974 = vld [vmem:[%s5 + $0x28] sm:$0x1]
  %v975 = vperm.slane %v974, 0
  %v977 = vsel %vm213, %v968, 0
  %v980 = vsel %vm213, %v969, 0
  %982 = vmatpush.msra.mxu0 0.0
  %983 = vmatpush.msra.mxu0 0.0
  %984 = vmatpush.msra.mxu0 0.0
  %985 = vmatpush.msra.mxu0 0.0
  %986 = vmatpush.msra.mxu0 0.0
  %987 = vmatpush.msra.mxu0 0.0
  %988 = vmatpush.msra.mxu0 0.0
  %989 = vmatpush.msra.mxu0 0.0
  %990 = vmatpush.msra.mxu0 0.0
  %991 = vmatpush.msra.mxu0 0.0
  %992 = vmatpush.msra.mxu0 0.0
  %993 = vmatpush.msra.mxu0 0.0
  %994 = vmatpush.msra.mxu0 %v973
  %995 = vmatpush.msra.mxu0 %v972
  %996 = vmatpush.msra.mxu0 %v971
  %997 = vmatpush.msra.mxu0 %v970
  %998 = vmatmul.f32.gmra.mxu0 %v977
  %v999 = vpop.f32.mrf.mxu0
  %v1000 = vadd.f32 %v975, %v999
  %1001 = vmatmul.f32.gmra.mxu0 %v980
  %v1002 = vpop.f32.mrf.mxu0
  %v1003 = vadd.f32 %v975, %v1002
  %1004 = vdwg.mxu0
  %v1005 = vmax.f32 %v1000, 0.0
  %v1006 = vmax.f32 %v1003, 0.0
  %v1007 = vld [vmem:[%s4 + $0xf8] sm:$0xff]
  %v1008 = vld [vmem:[%s4 + $0x100] sm:$0xff]
  %v1009 = vld [vmem:[%s4 + $0x108] sm:$0xff]
  %v1010 = vld [vmem:[%s4 + $0x110] sm:$0xff]
  %v1011 = vld [vmem:[%s4 + $0x118] sm:$0xff]
  %v1012 = vld [vmem:[%s4 + $0x120] sm:$0xff]
  %v1013 = vld [vmem:[%s4 + $0x128] sm:$0xff]
  %v1014 = vld [vmem:[%s4 + $0x130] sm:$0xff]
  %1015 = vmatpush.msra.mxu0 0.0
  %1016 = vmatpush.msra.mxu0 0.0
  %1017 = vmatpush.msra.mxu0 0.0
  %1018 = vmatpush.msra.mxu0 0.0
  %1019 = vmatpush.msra.mxu0 0.0
  %1020 = vmatpush.msra.mxu0 0.0
  %1021 = vmatpush.msra.mxu0 0.0
  %1022 = vmatpush.msra.mxu0 0.0
  %1023 = vmatpush.msra.mxu0 0.0
  %1024 = vmatpush.msra.mxu0 0.0
  %1025 = vmatpush.msra.mxu0 0.0
  %1026 = vmatpush.msra.mxu0 0.0
  %1027 = vmatpush.msra.mxu0 %v1014
  %1028 = vmatpush.msra.mxu0 %v1013
  %1029 = vmatpush.msra.mxu0 %v1012
  %1030 = vmatpush.msra.mxu0 %v1011
  %1031 = vmatmul.f32.gmra.mxu0 %v977
  %v1032 = vpop.f32.mrf.mxu0
  %v1033 = vadd.f32 0.0, %v1032
  %1034 = vmatmul.f32.gmra.mxu0 %v980
  %v1035 = vpop.f32.mrf.mxu0
  %v1036 = vadd.f32 0.0, %v1035
  %1037 = vdwg.mxu0
  %v1039 = vsel %vm213, %v1005, 0
  %v1042 = vsel %vm213, %v1006, 0
  %1044 = vmatpush.msra.mxu0 0.0
  %1045 = vmatpush.msra.mxu0 0.0
  %1046 = vmatpush.msra.mxu0 0.0
  %1047 = vmatpush.msra.mxu0 0.0
  %1048 = vmatpush.msra.mxu0 0.0
  %1049 = vmatpush.msra.mxu0 0.0
  %1050 = vmatpush.msra.mxu0 0.0
  %1051 = vmatpush.msra.mxu0 0.0
  %1052 = vmatpush.msra.mxu0 0.0
  %1053 = vmatpush.msra.mxu0 0.0
  %1054 = vmatpush.msra.mxu0 0.0
  %1055 = vmatpush.msra.mxu0 0.0
  %1056 = vmatpush.msra.mxu0 %v1010
  %1057 = vmatpush.msra.mxu0 %v1009
  %1058 = vmatpush.msra.mxu0 %v1008
  %1059 = vmatpush.msra.mxu0 %v1007
  %1060 = vmatmul.f32.gmra.mxu0 %v1039
  %v1061 = vpop.f32.mrf.mxu0
  %v1062 = vadd.f32 %v1033, %v1061
  %1063 = vmatmul.f32.gmra.mxu0 %v1042
  %v1064 = vpop.f32.mrf.mxu0
  %v1065 = vadd.f32 %v1036, %v1064
  %1066 = vdwg.mxu0
  %v1067 = vld [vmem:[%s5 + $0x30] sm:$0x1]
  %v1068 = vperm.slane %v1067, 0
  %v1069 = vadd.f32 %v1062, %v1068
  %v1070 = vadd.f32 %v1065, %v1068
  %v1071 = vmax.f32 %v1069, 0.0
  %v1072 = vmax.f32 %v1070, 0.0
  %1073 = vst [vmem:[%s6] sm:$0xff] %v1071
  %1074 = vst [vmem:[%s6 + $0x8] sm:$0xff] %v1072
  // Predicated region
  $region26: #{cgae_forward.1} parent=0 // pred_check
    _
  $region27: #{cgae_forward.1} parent=0 // pred_check_branch
    %1076 = sbr.rel (0) target = $region29
  $region28: #{cgae_forward.1} parent=0 // pred_region
    _
  $region29: #{cgae_forward.1} parent=0 // pred_fallthru
    _
  // Predicated region
  $region30: #{cgae_forward.1} parent=0 // pred_check
    _
  $region31: #{cgae_forward.1} parent=0 // pred_check_branch
    %1078 = sbr.rel (0) target = $region33
  $region32: #{cgae_forward.1} parent=0 // pred_region
    _
  $region33: #{cgae_forward.1} parent=0 // pred_fallthru
    _

</llo_original>
